<compile_context>
chip_gen: v5e
topology: v5e:2x2
jax: 0.10.0
libtpu: 0.0.40
codegen_flags: <defaults>
</compile_context>

<pallas_src>
import functools

import jax
import jax.numpy as jnp
from jax import lax
from jax.experimental import pallas as pl
from jax.experimental.pallas import tpu as pltpu


def _lstm_chunk_kernel(x_ref, h0_ref, c0_ref, wx_ref, wh_ref, b_ref,
                       out_ref, h_scr, c_scr, zx_scr, *, unroll):
    """One time-chunk of the LSTM recurrence.

    x_ref   : [Tc*B, I]   input rows for this chunk (time-major, flattened)
    h0_ref  : [B, H]      initial hidden state (used only on chunk 0)
    c0_ref  : [B, H]      initial cell state   (used only on chunk 0)
    wx_ref  : [I, 4H]     fused gate weights for x (gate order: f, i, c~, o)
    wh_ref  : [H, 4H]     fused gate weights for h
    b_ref   : [1, 4H]     fused gate bias
    out_ref : [Tc*B, 2H]  packed outputs (h in [..., :H], c in [..., H:])
    h_scr   : [B, H] f32  hidden-state carry across grid steps
    c_scr   : [B, H] f32  cell-state carry across grid steps
    zx_scr  : [Tc*B, 4H] f32  precomputed x-projection (+bias) for this chunk
    """
    B, H = h0_ref.shape
    Tc = x_ref.shape[0] // B

    # Initialize the recurrent carry on the first chunk only.
    @pl.when(pl.program_id(0) == 0)
    def _():
        h_scr[...] = h0_ref[...].astype(jnp.float32)
        c_scr[...] = c0_ref[...].astype(jnp.float32)

    wh = wh_ref[...]  # resident in vregs for the whole chunk

    # Hoisted input projection: one wide MXU matmul for the whole chunk, bias
    # folded in here so the [1,4H]->[Tc*B,4H] broadcast happens exactly once.
    zx_scr[...] = (jnp.dot(x_ref[...], wx_ref[...],
                           preferred_element_type=jnp.float32)
                   + b_ref[...].astype(jnp.float32))

    def step(t, carry):
        h, c = carry                                    # f32 [B, H] each
        row = pl.multiple_of(t * B, B)                  # 8-aligned sublane offset

        # Serial chain: only the h-projection remains on the critical path.
        z = zx_scr[pl.ds(row, B), :] + jnp.dot(
            h.astype(wh.dtype), wh, preferred_element_type=jnp.float32)

        sg = jax.nn.sigmoid(z)                          # ONE EUP pass on [B,4H]
        tg = jnp.tanh(z)                                # ONE EUP pass on [B,4H]
        f = sg[:, 0 * H:1 * H]
        i = sg[:, 1 * H:2 * H]
        o = sg[:, 3 * H:4 * H]
        c_tilde = tg[:, 2 * H:3 * H]

        c_new = f * c + i * c_tilde
        h_new = o * jnp.tanh(c_new)

        # Lane-packed store: one [B, 2H] write per step.
        out_ref[pl.ds(row, B), :] = jnp.concatenate(
            [h_new, c_new], axis=-1).astype(out_ref.dtype)
        return h_new, c_new

    h, c = lax.fori_loop(0, Tc, step, (h_scr[...], c_scr[...]), unroll=unroll)
    h_scr[...] = h
    c_scr[...] = c


def fuse_params(params, input_size):
    """Pack (Wf,bf,Wi,bi,Wc,bc,Wo,bo) -> (Wx [I,4H], Wh [H,4H], b [1,4H])."""
    Wf, bf, Wi, bi, Wc, bc, Wo, bo = params
    W = jnp.concatenate([Wf, Wi, Wc, Wo], axis=1)            # [I+H, 4H]
    Wx = W[:input_size]                                      # [I, 4H]
    Wh = W[input_size:]                                      # [H, 4H]
    b = jnp.concatenate([bf, bi, bc, bo], axis=0)[None, :]   # [1, 4H]
    return Wx, Wh, b


def lstm_sequence_pallas(x_seq, h0, c0, params, *, time_chunk=None):
    """Apply the LSTM cell T times inside a single pallas_call.

    x_seq: [T, B, I], h0/c0: [B, H]. Returns (h_seq [T,B,H], c_seq [T,B,H]),
    identical to applying the module's forward step-by-step.
    """
    T, B, I = x_seq.shape
    H = h0.shape[1]
    Wx, Wh, b = fuse_params(params, I)

    # Time chunk: whole sequence for small T, else chunked so VMEM use is
    # bounded independent of T (these sizes are tiny vs v7x's 64 MiB VMEM).
    if time_chunk is None:
        time_chunk = T if T <= 32 else 32
    Tc = max(1, min(time_chunk, T))
    n_chunks = pl.cdiv(T, Tc)
    T_pad = n_chunks * Tc

    x_in = x_seq
    if T_pad != T:
        pad = jnp.zeros((T_pad - T, B, I), x_seq.dtype)
        x_in = jnp.concatenate([x_seq, pad], axis=0)
    x2d = x_in.reshape(T_pad * B, I)                     # 2-D, no in-kernel reshape

    unroll = True if Tc <= 16 else 8
    kernel = functools.partial(_lstm_chunk_kernel, unroll=unroll)

    itemsize = jnp.dtype(x_seq.dtype).itemsize
    cost = pl.CostEstimate(
        flops=2 * T_pad * B * (I + H) * 4 * H,
        transcendentals=5 * T_pad * B * H,
        bytes_accessed=(T_pad * B * I * itemsize            # x in
                        + T_pad * B * 2 * H * itemsize      # packed h,c out
                        + (I + H) * 4 * H * 4 + 4 * H * 4   # weights + bias
                        + 2 * B * H * itemsize),            # h0, c0
    )

    packed = pl.pallas_call(
        kernel,
        grid=(n_chunks,),
        out_shape=jax.ShapeDtypeStruct((T_pad * B, 2 * H), x_seq.dtype),
        in_specs=[
            pl.BlockSpec((Tc * B, I), lambda t: (t, 0)),      # x chunk (pipelined)
            pl.BlockSpec((B, H), lambda t: (0, 0)),           # h0 (resident)
            pl.BlockSpec((B, H), lambda t: (0, 0)),           # c0 (resident)
            pl.BlockSpec((I, 4 * H), lambda t: (0, 0)),       # Wx (resident)
            pl.BlockSpec((H, 4 * H), lambda t: (0, 0)),       # Wh (resident)
            pl.BlockSpec((1, 4 * H), lambda t: (0, 0)),       # bias (resident)
        ],
        out_specs=pl.BlockSpec((Tc * B, 2 * H), lambda t: (t, 0)),
        scratch_shapes=[
            pltpu.VMEM((B, H), jnp.float32),                  # h carry
            pltpu.VMEM((B, H), jnp.float32),                  # c carry
            pltpu.VMEM((Tc * B, 4 * H), jnp.float32),         # precomputed zx
        ],
        compiler_params=pltpu.CompilerParams(
            dimension_semantics=("arbitrary",)),              # time is sequential
        cost_estimate=cost,
    )(x2d, h0, c0, Wx, Wh, b)

    packed = packed.reshape(T_pad, B, 2 * H)[:T]
    return packed[..., :H], packed[..., H:]


def lstm_cell_pallas(x, h_prev, c_prev, params):
    """Single LSTM cell step — exact semantics of CustomLSTMCell.forward."""
    h_seq, c_seq = lstm_sequence_pallas(x[None], h_prev, c_prev, params)
    return h_seq[0], c_seq[0]


def init_params(key, input_size, hidden_size, dtype=jnp.float32):
    """Deterministic init matching the module: xavier_uniform 2D, zero biases."""
    K = input_size + hidden_size
    H = hidden_size
    bound = (6.0 / (K + H)) ** 0.5
    keys = jax.random.split(key, 4)
    Ws = [jax.random.uniform(k, (K, H), dtype, minval=-bound, maxval=bound)
          for k in keys]
    bs = [jnp.zeros((H,), dtype) for _ in range(4)]
    return (Ws[0], bs[0], Ws[1], bs[1], Ws[2], bs[2], Ws[3], bs[3])


def lstm_cell_ref(x, h_prev, c_prev, params):
    """Pure-JAX reference (mirrors the PyTorch forward exactly)."""
    Wf, bf, Wi, bi, Wc, bc, Wo, bo = params
    comb = jnp.concatenate([x, h_prev], axis=1)
    f = jax.nn.sigmoid(comb @ Wf + bf)
    i = jax.nn.sigmoid(comb @ Wi + bi)
    c_tilde = jnp.tanh(comb @ Wc + bc)
    c = f * c_prev + i * c_tilde
    o = jax.nn.sigmoid(comb @ Wo + bo)
    h = o * jnp.tanh(c)
    return h, c


if __name__ == "__main__":
    B, input_size, hidden_size, T = 8, 16, 32, 8

    key = jax.random.PRNGKey(0)
    kp, kx, kh, kc = jax.random.split(key, 4)

    params = init_params(kp, input_size, hidden_size)
    x_seq = jax.random.normal(kx, (T, B, input_size), jnp.float32)
    h0 = jax.random.normal(kh, (B, hidden_size), jnp.float32)
    c0 = jax.random.normal(kc, (B, hidden_size), jnp.float32)

    # Whole sequence (T cell applications) in ONE pallas_call.
    h_seq, c_seq = jax.jit(lstm_sequence_pallas)(x_seq, h0, c0, params)
    jax.block_until_ready((h_seq, c_seq))

    # Reference: apply the pure-JAX cell step-by-step.
    h_ref, c_ref = h0, c0
    for t in range(T):
        h_ref, c_ref = lstm_cell_ref(x_seq[t], h_ref, c_ref, params)
        assert jnp.allclose(h_seq[t], h_ref, atol=1e-5, rtol=1e-5), f"h mismatch t={t}"
        assert jnp.allclose(c_seq[t], c_ref, atol=1e-5, rtol=1e-5), f"c mismatch t={t}"

    # Chunked + padded path: T=20 with chunk 8 -> 3 grid steps, 4 padded steps.
    T2 = 20
    x2 = jax.random.normal(jax.random.PRNGKey(1), (T2, B, input_size), jnp.float32)
    chunked = jax.jit(functools.partial(lstm_sequence_pallas, time_chunk=8))
    h2, c2 = chunked(x2, h0, c0, params)
    jax.block_until_ready((h2, c2))
    h_ref, c_ref = h0, c0
    for t in range(T2):
        h_ref, c_ref = lstm_cell_ref(x2[t], h_ref, c_ref, params)
        assert jnp.allclose(h2[t], h_ref, atol=1e-5, rtol=1e-5), f"chunked h mismatch t={t}"
        assert jnp.allclose(c2[t], c_ref, atol=1e-5, rtol=1e-5), f"chunked c mismatch t={t}"

    # Single-step path (module forward semantics).
    h1, c1 = lstm_cell_pallas(x_seq[0], h0, c0, params)
    jax.block_until_ready((h1, c1))
    h1_ref, c1_ref = lstm_cell_ref(x_seq[0], h0, c0, params)
    assert jnp.allclose(h1, h1_ref, atol=1e-5, rtol=1e-5), "single-step h mismatch"
    assert jnp.allclose(c1, c1_ref, atol=1e-5, rtol=1e-5), "single-step c mismatch"

    print("KERNEL_OK")
</pallas_src>

<mosaic_0001>
module attributes {stable_mosaic.version = 11 : i64} {
  func.func @_lstm_chunk_kernel(%arg0: i32, %arg1: memref<64x16xf32, #tpu.memory_space<vmem>>, %arg2: memref<8x32xf32, #tpu.memory_space<vmem>>, %arg3: memref<8x32xf32, #tpu.memory_space<vmem>>, %arg4: memref<16x128xf32, #tpu.memory_space<vmem>>, %arg5: memref<32x128xf32, #tpu.memory_space<vmem>>, %arg6: memref<1x128xf32, #tpu.memory_space<vmem>>, %arg7: memref<64x64xf32, #tpu.memory_space<vmem>>, %arg8: memref<8x32xf32, #tpu.memory_space<vmem>>, %arg9: memref<8x32xf32, #tpu.memory_space<vmem>>, %arg10: memref<64x128xf32, #tpu.memory_space<vmem>>) attributes {dimension_semantics = [#tpu.dimension_semantics<arbitrary>], iteration_bounds = array<i64: 1>, scalar_prefetch = 0 : i64, scratch_operands = 3 : i64, tpu.core_type = #tpu.core_type<tc>, window_params = [{transform_indices = @transform_0, window_bounds = array<i64: 64, 16>}, {pipeline_mode = #tpu.pipeline_mode<synchronous>, transform_indices = @transform_1, window_bounds = array<i64: 8, 32>}, {pipeline_mode = #tpu.pipeline_mode<synchronous>, transform_indices = @transform_2, window_bounds = array<i64: 8, 32>}, {pipeline_mode = #tpu.pipeline_mode<synchronous>, transform_indices = @transform_3, window_bounds = array<i64: 16, 128>}, {pipeline_mode = #tpu.pipeline_mode<synchronous>, transform_indices = @transform_4, window_bounds = array<i64: 32, 128>}, {pipeline_mode = #tpu.pipeline_mode<synchronous>, transform_indices = @transform_5, window_bounds = array<i64: 1, 128>}, {transform_indices = @transform_6, window_bounds = array<i64: 64, 64>}]} {
    %c0_i32 = arith.constant 0 : i32
    %0 = arith.cmpi eq, %arg0, %c0_i32 : i32
    %1 = arith.extui %0 : i1 to i32
    %c0_i32_0 = arith.constant 0 : i32
    %2 = arith.cmpi ne, %1, %c0_i32_0 : i32
    scf.if %2 {
      %c0_59 = arith.constant 0 : index
      %c0_60 = arith.constant 0 : index
      %207 = vector.load %arg2[%c0_59, %c0_60] : memref<8x32xf32, #tpu.memory_space<vmem>>, vector<8x32xf32>
      %c0_61 = arith.constant 0 : index
      %c0_62 = arith.constant 0 : index
      %208 = vector.load %arg8[%c0_61, %c0_62] : memref<8x32xf32, #tpu.memory_space<vmem>>, vector<8x32xf32>
      tpu.vector_store %arg8[%c0_61, %c0_62], %207 {strides = array<i32>} : memref<8x32xf32, #tpu.memory_space<vmem>>, vector<8x32xf32>,
      %c0_63 = arith.constant 0 : index
      %c0_64 = arith.constant 0 : index
      %209 = vector.load %arg3[%c0_63, %c0_64] : memref<8x32xf32, #tpu.memory_space<vmem>>, vector<8x32xf32>
      %c0_65 = arith.constant 0 : index
      %c0_66 = arith.constant 0 : index
      %210 = vector.load %arg9[%c0_65, %c0_66] : memref<8x32xf32, #tpu.memory_space<vmem>>, vector<8x32xf32>
      tpu.vector_store %arg9[%c0_65, %c0_66], %209 {strides = array<i32>} : memref<8x32xf32, #tpu.memory_space<vmem>>, vector<8x32xf32>,
    } else {
    }
    %c0 = arith.constant 0 : index
    %c0_1 = arith.constant 0 : index
    %3 = vector.load %arg5[%c0, %c0_1] : memref<32x128xf32, #tpu.memory_space<vmem>>, vector<32x128xf32>
    %c0_2 = arith.constant 0 : index
    %c0_3 = arith.constant 0 : index
    %4 = vector.load %arg1[%c0_2, %c0_3] : memref<64x16xf32, #tpu.memory_space<vmem>>, vector<64x16xf32>
    %c0_4 = arith.constant 0 : index
    %c0_5 = arith.constant 0 : index
    %5 = vector.load %arg4[%c0_4, %c0_5] : memref<16x128xf32, #tpu.memory_space<vmem>>, vector<16x128xf32>
    %cst = arith.constant dense<0.000000e+00> : vector<64x128xf32>
    %6 = tpu.matmul %4, %5, %cst {dimension_numbers = #tpu.dot_dimension_numbers<[1], [0], [0], [1], [0, 0, 1, 1], [], []>} : vector<64x16xf32>, vector<16x128xf32>, vector<64x128xf32> -> vector<64x128xf32>
    %c0_6 = arith.constant 0 : index
    %c0_7 = arith.constant 0 : index
    %7 = vector.load %arg6[%c0_6, %c0_7] : memref<1x128xf32, #tpu.memory_space<vmem>>, vector<1x128xf32>
    %8 = vector.broadcast %7 : vector<1x128xf32> to vector<64x128xf32>
    %9 = arith.addf %6, %8 : vector<64x128xf32>
    %c0_8 = arith.constant 0 : index
    %c0_9 = arith.constant 0 : index
    %10 = vector.load %arg10[%c0_8, %c0_9] : memref<64x128xf32, #tpu.memory_space<vmem>>, vector<64x128xf32>
    tpu.vector_store %arg10[%c0_8, %c0_9], %9 {strides = array<i32>} : memref<64x128xf32, #tpu.memory_space<vmem>>, vector<64x128xf32>,
    %c0_10 = arith.constant 0 : index
    %c0_11 = arith.constant 0 : index
    %11 = vector.load %arg8[%c0_10, %c0_11] : memref<8x32xf32, #tpu.memory_space<vmem>>, vector<8x32xf32>
    %c0_12 = arith.constant 0 : index
    %c0_13 = arith.constant 0 : index
    %12 = vector.load %arg9[%c0_12, %c0_13] : memref<8x32xf32, #tpu.memory_space<vmem>>, vector<8x32xf32>
    %c0_i32_14 = arith.constant 0 : i32
    %c8_i32 = arith.constant 8 : i32
    %13 = arith.muli %c0_i32_14, %c8_i32 : i32
    %14 = tpu.assume_multiple %13, 8 : i32
    %15 = arith.index_cast %14 : i32 to index
    %c0_15 = arith.constant 0 : index
    %16 = vector.load %arg10[%15, %c0_15] : memref<64x128xf32, #tpu.memory_space<vmem>>, vector<8x128xf32>
    %cst_16 = arith.constant dense<0.000000e+00> : vector<8x128xf32>
    %17 = tpu.matmul %11, %3, %cst_16 {dimension_numbers = #tpu.dot_dimension_numbers<[1], [0], [0], [1], [0, 0, 1, 1], [], []>} : vector<8x32xf32>, vector<32x128xf32>, vector<8x128xf32> -> vector<8x128xf32>
    %18 = arith.addf %16, %17 : vector<8x128xf32>
    %19 = arith.negf %18 : vector<8x128xf32>
    %20 = math.exp %19 : vector<8x128xf32>
    %cst_17 = arith.constant 1.000000e+00 : f32
    %21 = vector.broadcast %cst_17 : f32 to vector<8x128xf32>
    %22 = arith.addf %21, %20 : vector<8x128xf32>
    %23 = arith.divf %21, %22 : vector<8x128xf32>
    %24 = math.tanh %18 : vector<8x128xf32>
    %25 = vector.extract_strided_slice %23 {offsets = [0, 0], sizes = [8, 32], strides = [1, 1]} : vector<8x128xf32> to vector<8x32xf32>
    %26 = vector.extract_strided_slice %23 {offsets = [0, 32], sizes = [8, 32], strides = [1, 1]} : vector<8x128xf32> to vector<8x32xf32>
    %27 = vector.extract_strided_slice %23 {offsets = [0, 96], sizes = [8, 32], strides = [1, 1]} : vector<8x128xf32> to vector<8x32xf32>
    %28 = vector.extract_strided_slice %24 {offsets = [0, 64], sizes = [8, 32], strides = [1, 1]} : vector<8x128xf32> to vector<8x32xf32>
    %29 = arith.mulf %25, %12 : vector<8x32xf32>
    %30 = arith.mulf %26, %28 : vector<8x32xf32>
    %31 = arith.addf %29, %30 : vector<8x32xf32>
    %32 = math.tanh %31 : vector<8x32xf32>
    %33 = arith.mulf %27, %32 : vector<8x32xf32>
    %34 = tpu.concatenate %33, %31 in 1 : vector<8x32xf32>, vector<8x32xf32> -> vector<8x64xf32>
    %35 = arith.index_cast %14 : i32 to index
    %c0_18 = arith.constant 0 : index
    %36 = vector.load %arg7[%35, %c0_18] : memref<64x64xf32, #tpu.memory_space<vmem>>, vector<8x64xf32>
    tpu.vector_store %arg7[%35, %c0_18], %34 {strides = array<i32>} : memref<64x64xf32, #tpu.memory_space<vmem>>, vector<8x64xf32>,
    %c1_i32 = arith.constant 1 : i32
    %c8_i32_19 = arith.constant 8 : i32
    %37 = arith.muli %c1_i32, %c8_i32_19 : i32
    %38 = tpu.assume_multiple %37, 8 : i32
    %39 = arith.index_cast %38 : i32 to index
    %c0_20 = arith.constant 0 : index
    %40 = vector.load %arg10[%39, %c0_20] : memref<64x128xf32, #tpu.memory_space<vmem>>, vector<8x128xf32>
    %cst_21 = arith.constant dense<0.000000e+00> : vector<8x128xf32>
    %41 = tpu.matmul %33, %3, %cst_21 {dimension_numbers = #tpu.dot_dimension_numbers<[1], [0], [0], [1], [0, 0, 1, 1], [], []>} : vector<8x32xf32>, vector<32x128xf32>, vector<8x128xf32> -> vector<8x128xf32>
    %42 = arith.addf %40, %41 : vector<8x128xf32>
    %43 = arith.negf %42 : vector<8x128xf32>
    %44 = math.exp %43 : vector<8x128xf32>
    %cst_22 = arith.constant 1.000000e+00 : f32
    %45 = vector.broadcast %cst_22 : f32 to vector<8x128xf32>
    %46 = arith.addf %45, %44 : vector<8x128xf32>
    %47 = arith.divf %45, %46 : vector<8x128xf32>
    %48 = math.tanh %42 : vector<8x128xf32>
    %49 = vector.extract_strided_slice %47 {offsets = [0, 0], sizes = [8, 32], strides = [1, 1]} : vector<8x128xf32> to vector<8x32xf32>
    %50 = vector.extract_strided_slice %47 {offsets = [0, 32], sizes = [8, 32], strides = [1, 1]} : vector<8x128xf32> to vector<8x32xf32>
    %51 = vector.extract_strided_slice %47 {offsets = [0, 96], sizes = [8, 32], strides = [1, 1]} : vector<8x128xf32> to vector<8x32xf32>
    %52 = vector.extract_strided_slice %48 {offsets = [0, 64], sizes = [8, 32], strides = [1, 1]} : vector<8x128xf32> to vector<8x32xf32>
    %53 = arith.mulf %49, %31 : vector<8x32xf32>
    %54 = arith.mulf %50, %52 : vector<8x32xf32>
    %55 = arith.addf %53, %54 : vector<8x32xf32>
    %56 = math.tanh %55 : vector<8x32xf32>
    %57 = arith.mulf %51, %56 : vector<8x32xf32>
    %58 = tpu.concatenate %57, %55 in 1 : vector<8x32xf32>, vector<8x32xf32> -> vector<8x64xf32>
    %59 = arith.index_cast %38 : i32 to index
    %c0_23 = arith.constant 0 : index
    %60 = vector.load %arg7[%59, %c0_23] : memref<64x64xf32, #tpu.memory_space<vmem>>, vector<8x64xf32>
    tpu.vector_store %arg7[%59, %c0_23], %58 {strides = array<i32>} : memref<64x64xf32, #tpu.memory_space<vmem>>, vector<8x64xf32>,
    %c2_i32 = arith.constant 2 : i32
    %c8_i32_24 = arith.constant 8 : i32
    %61 = arith.muli %c2_i32, %c8_i32_24 : i32
    %62 = tpu.assume_multiple %61, 8 : i32
    %63 = arith.index_cast %62 : i32 to index
    %c0_25 = arith.constant 0 : index
    %64 = vector.load %arg10[%63, %c0_25] : memref<64x128xf32, #tpu.memory_space<vmem>>, vector<8x128xf32>
    %cst_26 = arith.constant dense<0.000000e+00> : vector<8x128xf32>
    %65 = tpu.matmul %57, %3, %cst_26 {dimension_numbers = #tpu.dot_dimension_numbers<[1], [0], [0], [1], [0, 0, 1, 1], [], []>} : vector<8x32xf32>, vector<32x128xf32>, vector<8x128xf32> -> vector<8x128xf32>
    %66 = arith.addf %64, %65 : vector<8x128xf32>
    %67 = arith.negf %66 : vector<8x128xf32>
    %68 = math.exp %67 : vector<8x128xf32>
    %cst_27 = arith.constant 1.000000e+00 : f32
    %69 = vector.broadcast %cst_27 : f32 to vector<8x128xf32>
    %70 = arith.addf %69, %68 : vector<8x128xf32>
    %71 = arith.divf %69, %70 : vector<8x128xf32>
    %72 = math.tanh %66 : vector<8x128xf32>
    %73 = vector.extract_strided_slice %71 {offsets = [0, 0], sizes = [8, 32], strides = [1, 1]} : vector<8x128xf32> to vector<8x32xf32>
    %74 = vector.extract_strided_slice %71 {offsets = [0, 32], sizes = [8, 32], strides = [1, 1]} : vector<8x128xf32> to vector<8x32xf32>
    %75 = vector.extract_strided_slice %71 {offsets = [0, 96], sizes = [8, 32], strides = [1, 1]} : vector<8x128xf32> to vector<8x32xf32>
    %76 = vector.extract_strided_slice %72 {offsets = [0, 64], sizes = [8, 32], strides = [1, 1]} : vector<8x128xf32> to vector<8x32xf32>
    %77 = arith.mulf %73, %55 : vector<8x32xf32>
    %78 = arith.mulf %74, %76 : vector<8x32xf32>
    %79 = arith.addf %77, %78 : vector<8x32xf32>
    %80 = math.tanh %79 : vector<8x32xf32>
    %81 = arith.mulf %75, %80 : vector<8x32xf32>
    %82 = tpu.concatenate %81, %79 in 1 : vector<8x32xf32>, vector<8x32xf32> -> vector<8x64xf32>
    %83 = arith.index_cast %62 : i32 to index
    %c0_28 = arith.constant 0 : index
    %84 = vector.load %arg7[%83, %c0_28] : memref<64x64xf32, #tpu.memory_space<vmem>>, vector<8x64xf32>
    tpu.vector_store %arg7[%83, %c0_28], %82 {strides = array<i32>} : memref<64x64xf32, #tpu.memory_space<vmem>>, vector<8x64xf32>,
    %c3_i32 = arith.constant 3 : i32
    %c8_i32_29 = arith.constant 8 : i32
    %85 = arith.muli %c3_i32, %c8_i32_29 : i32
    %86 = tpu.assume_multiple %85, 8 : i32
    %87 = arith.index_cast %86 : i32 to index
    %c0_30 = arith.constant 0 : index
    %88 = vector.load %arg10[%87, %c0_30] : memref<64x128xf32, #tpu.memory_space<vmem>>, vector<8x128xf32>
    %cst_31 = arith.constant dense<0.000000e+00> : vector<8x128xf32>
    %89 = tpu.matmul %81, %3, %cst_31 {dimension_numbers = #tpu.dot_dimension_numbers<[1], [0], [0], [1], [0, 0, 1, 1], [], []>} : vector<8x32xf32>, vector<32x128xf32>, vector<8x128xf32> -> vector<8x128xf32>
    %90 = arith.addf %88, %89 : vector<8x128xf32>
    %91 = arith.negf %90 : vector<8x128xf32>
    %92 = math.exp %91 : vector<8x128xf32>
    %cst_32 = arith.constant 1.000000e+00 : f32
    %93 = vector.broadcast %cst_32 : f32 to vector<8x128xf32>
    %94 = arith.addf %93, %92 : vector<8x128xf32>
    %95 = arith.divf %93, %94 : vector<8x128xf32>
    %96 = math.tanh %90 : vector<8x128xf32>
    %97 = vector.extract_strided_slice %95 {offsets = [0, 0], sizes = [8, 32], strides = [1, 1]} : vector<8x128xf32> to vector<8x32xf32>
    %98 = vector.extract_strided_slice %95 {offsets = [0, 32], sizes = [8, 32], strides = [1, 1]} : vector<8x128xf32> to vector<8x32xf32>
    %99 = vector.extract_strided_slice %95 {offsets = [0, 96], sizes = [8, 32], strides = [1, 1]} : vector<8x128xf32> to vector<8x32xf32>
    %100 = vector.extract_strided_slice %96 {offsets = [0, 64], sizes = [8, 32], strides = [1, 1]} : vector<8x128xf32> to vector<8x32xf32>
    %101 = arith.mulf %97, %79 : vector<8x32xf32>
    %102 = arith.mulf %98, %100 : vector<8x32xf32>
    %103 = arith.addf %101, %102 : vector<8x32xf32>
    %104 = math.tanh %103 : vector<8x32xf32>
    %105 = arith.mulf %99, %104 : vector<8x32xf32>
    %106 = tpu.concatenate %105, %103 in 1 : vector<8x32xf32>, vector<8x32xf32> -> vector<8x64xf32>
    %107 = arith.index_cast %86 : i32 to index
    %c0_33 = arith.constant 0 : index
    %108 = vector.load %arg7[%107, %c0_33] : memref<64x64xf32, #tpu.memory_space<vmem>>, vector<8x64xf32>
    tpu.vector_store %arg7[%107, %c0_33], %106 {strides = array<i32>} : memref<64x64xf32, #tpu.memory_space<vmem>>, vector<8x64xf32>,
    %c4_i32 = arith.constant 4 : i32
    %c8_i32_34 = arith.constant 8 : i32
    %109 = arith.muli %c4_i32, %c8_i32_34 : i32
    %110 = tpu.assume_multiple %109, 8 : i32
    %111 = arith.index_cast %110 : i32 to index
    %c0_35 = arith.constant 0 : index
    %112 = vector.load %arg10[%111, %c0_35] : memref<64x128xf32, #tpu.memory_space<vmem>>, vector<8x128xf32>
    %cst_36 = arith.constant dense<0.000000e+00> : vector<8x128xf32>
    %113 = tpu.matmul %105, %3, %cst_36 {dimension_numbers = #tpu.dot_dimension_numbers<[1], [0], [0], [1], [0, 0, 1, 1], [], []>} : vector<8x32xf32>, vector<32x128xf32>, vector<8x128xf32> -> vector<8x128xf32>
    %114 = arith.addf %112, %113 : vector<8x128xf32>
    %115 = arith.negf %114 : vector<8x128xf32>
    %116 = math.exp %115 : vector<8x128xf32>
    %cst_37 = arith.constant 1.000000e+00 : f32
    %117 = vector.broadcast %cst_37 : f32 to vector<8x128xf32>
    %118 = arith.addf %117, %116 : vector<8x128xf32>
    %119 = arith.divf %117, %118 : vector<8x128xf32>
    %120 = math.tanh %114 : vector<8x128xf32>
    %121 = vector.extract_strided_slice %119 {offsets = [0, 0], sizes = [8, 32], strides = [1, 1]} : vector<8x128xf32> to vector<8x32xf32>
    %122 = vector.extract_strided_slice %119 {offsets = [0, 32], sizes = [8, 32], strides = [1, 1]} : vector<8x128xf32> to vector<8x32xf32>
    %123 = vector.extract_strided_slice %119 {offsets = [0, 96], sizes = [8, 32], strides = [1, 1]} : vector<8x128xf32> to vector<8x32xf32>
    %124 = vector.extract_strided_slice %120 {offsets = [0, 64], sizes = [8, 32], strides = [1, 1]} : vector<8x128xf32> to vector<8x32xf32>
    %125 = arith.mulf %121, %103 : vector<8x32xf32>
    %126 = arith.mulf %122, %124 : vector<8x32xf32>
    %127 = arith.addf %125, %126 : vector<8x32xf32>
    %128 = math.tanh %127 : vector<8x32xf32>
    %129 = arith.mulf %123, %128 : vector<8x32xf32>
    %130 = tpu.concatenate %129, %127 in 1 : vector<8x32xf32>, vector<8x32xf32> -> vector<8x64xf32>
    %131 = arith.index_cast %110 : i32 to index
    %c0_38 = arith.constant 0 : index
    %132 = vector.load %arg7[%131, %c0_38] : memref<64x64xf32, #tpu.memory_space<vmem>>, vector<8x64xf32>
    tpu.vector_store %arg7[%131, %c0_38], %130 {strides = array<i32>} : memref<64x64xf32, #tpu.memory_space<vmem>>, vector<8x64xf32>,
    %c5_i32 = arith.constant 5 : i32
    %c8_i32_39 = arith.constant 8 : i32
    %133 = arith.muli %c5_i32, %c8_i32_39 : i32
    %134 = tpu.assume_multiple %133, 8 : i32
    %135 = arith.index_cast %134 : i32 to index
    %c0_40 = arith.constant 0 : index
    %136 = vector.load %arg10[%135, %c0_40] : memref<64x128xf32, #tpu.memory_space<vmem>>, vector<8x128xf32>
    %cst_41 = arith.constant dense<0.000000e+00> : vector<8x128xf32>
    %137 = tpu.matmul %129, %3, %cst_41 {dimension_numbers = #tpu.dot_dimension_numbers<[1], [0], [0], [1], [0, 0, 1, 1], [], []>} : vector<8x32xf32>, vector<32x128xf32>, vector<8x128xf32> -> vector<8x128xf32>
    %138 = arith.addf %136, %137 : vector<8x128xf32>
    %139 = arith.negf %138 : vector<8x128xf32>
    %140 = math.exp %139 : vector<8x128xf32>
    %cst_42 = arith.constant 1.000000e+00 : f32
    %141 = vector.broadcast %cst_42 : f32 to vector<8x128xf32>
    %142 = arith.addf %141, %140 : vector<8x128xf32>
    %143 = arith.divf %141, %142 : vector<8x128xf32>
    %144 = math.tanh %138 : vector<8x128xf32>
    %145 = vector.extract_strided_slice %143 {offsets = [0, 0], sizes = [8, 32], strides = [1, 1]} : vector<8x128xf32> to vector<8x32xf32>
    %146 = vector.extract_strided_slice %143 {offsets = [0, 32], sizes = [8, 32], strides = [1, 1]} : vector<8x128xf32> to vector<8x32xf32>
    %147 = vector.extract_strided_slice %143 {offsets = [0, 96], sizes = [8, 32], strides = [1, 1]} : vector<8x128xf32> to vector<8x32xf32>
    %148 = vector.extract_strided_slice %144 {offsets = [0, 64], sizes = [8, 32], strides = [1, 1]} : vector<8x128xf32> to vector<8x32xf32>
    %149 = arith.mulf %145, %127 : vector<8x32xf32>
    %150 = arith.mulf %146, %148 : vector<8x32xf32>
    %151 = arith.addf %149, %150 : vector<8x32xf32>
    %152 = math.tanh %151 : vector<8x32xf32>
    %153 = arith.mulf %147, %152 : vector<8x32xf32>
    %154 = tpu.concatenate %153, %151 in 1 : vector<8x32xf32>, vector<8x32xf32> -> vector<8x64xf32>
    %155 = arith.index_cast %134 : i32 to index
    %c0_43 = arith.constant 0 : index
    %156 = vector.load %arg7[%155, %c0_43] : memref<64x64xf32, #tpu.memory_space<vmem>>, vector<8x64xf32>
    tpu.vector_store %arg7[%155, %c0_43], %154 {strides = array<i32>} : memref<64x64xf32, #tpu.memory_space<vmem>>, vector<8x64xf32>,
    %c6_i32 = arith.constant 6 : i32
    %c8_i32_44 = arith.constant 8 : i32
    %157 = arith.muli %c6_i32, %c8_i32_44 : i32
    %158 = tpu.assume_multiple %157, 8 : i32
    %159 = arith.index_cast %158 : i32 to index
    %c0_45 = arith.constant 0 : index
    %160 = vector.load %arg10[%159, %c0_45] : memref<64x128xf32, #tpu.memory_space<vmem>>, vector<8x128xf32>
    %cst_46 = arith.constant dense<0.000000e+00> : vector<8x128xf32>
    %161 = tpu.matmul %153, %3, %cst_46 {dimension_numbers = #tpu.dot_dimension_numbers<[1], [0], [0], [1], [0, 0, 1, 1], [], []>} : vector<8x32xf32>, vector<32x128xf32>, vector<8x128xf32> -> vector<8x128xf32>
    %162 = arith.addf %160, %161 : vector<8x128xf32>
    %163 = arith.negf %162 : vector<8x128xf32>
    %164 = math.exp %163 : vector<8x128xf32>
    %cst_47 = arith.constant 1.000000e+00 : f32
    %165 = vector.broadcast %cst_47 : f32 to vector<8x128xf32>
    %166 = arith.addf %165, %164 : vector<8x128xf32>
    %167 = arith.divf %165, %166 : vector<8x128xf32>
    %168 = math.tanh %162 : vector<8x128xf32>
    %169 = vector.extract_strided_slice %167 {offsets = [0, 0], sizes = [8, 32], strides = [1, 1]} : vector<8x128xf32> to vector<8x32xf32>
    %170 = vector.extract_strided_slice %167 {offsets = [0, 32], sizes = [8, 32], strides = [1, 1]} : vector<8x128xf32> to vector<8x32xf32>
    %171 = vector.extract_strided_slice %167 {offsets = [0, 96], sizes = [8, 32], strides = [1, 1]} : vector<8x128xf32> to vector<8x32xf32>
    %172 = vector.extract_strided_slice %168 {offsets = [0, 64], sizes = [8, 32], strides = [1, 1]} : vector<8x128xf32> to vector<8x32xf32>
    %173 = arith.mulf %169, %151 : vector<8x32xf32>
    %174 = arith.mulf %170, %172 : vector<8x32xf32>
    %175 = arith.addf %173, %174 : vector<8x32xf32>
    %176 = math.tanh %175 : vector<8x32xf32>
    %177 = arith.mulf %171, %176 : vector<8x32xf32>
    %178 = tpu.concatenate %177, %175 in 1 : vector<8x32xf32>, vector<8x32xf32> -> vector<8x64xf32>
    %179 = arith.index_cast %158 : i32 to index
    %c0_48 = arith.constant 0 : index
    %180 = vector.load %arg7[%179, %c0_48] : memref<64x64xf32, #tpu.memory_space<vmem>>, vector<8x64xf32>
    tpu.vector_store %arg7[%179, %c0_48], %178 {strides = array<i32>} : memref<64x64xf32, #tpu.memory_space<vmem>>, vector<8x64xf32>,
    %c7_i32 = arith.constant 7 : i32
    %c8_i32_49 = arith.constant 8 : i32
    %181 = arith.muli %c7_i32, %c8_i32_49 : i32
    %182 = tpu.assume_multiple %181, 8 : i32
    %183 = arith.index_cast %182 : i32 to index
    %c0_50 = arith.constant 0 : index
    %184 = vector.load %arg10[%183, %c0_50] : memref<64x128xf32, #tpu.memory_space<vmem>>, vector<8x128xf32>
    %cst_51 = arith.constant dense<0.000000e+00> : vector<8x128xf32>
    %185 = tpu.matmul %177, %3, %cst_51 {dimension_numbers = #tpu.dot_dimension_numbers<[1], [0], [0], [1], [0, 0, 1, 1], [], []>} : vector<8x32xf32>, vector<32x128xf32>, vector<8x128xf32> -> vector<8x128xf32>
    %186 = arith.addf %184, %185 : vector<8x128xf32>
    %187 = arith.negf %186 : vector<8x128xf32>
    %188 = math.exp %187 : vector<8x128xf32>
    %cst_52 = arith.constant 1.000000e+00 : f32
    %189 = vector.broadcast %cst_52 : f32 to vector<8x128xf32>
    %190 = arith.addf %189, %188 : vector<8x128xf32>
    %191 = arith.divf %189, %190 : vector<8x128xf32>
    %192 = math.tanh %186 : vector<8x128xf32>
    %193 = vector.extract_strided_slice %191 {offsets = [0, 0], sizes = [8, 32], strides = [1, 1]} : vector<8x128xf32> to vector<8x32xf32>
    %194 = vector.extract_strided_slice %191 {offsets = [0, 32], sizes = [8, 32], strides = [1, 1]} : vector<8x128xf32> to vector<8x32xf32>
    %195 = vector.extract_strided_slice %191 {offsets = [0, 96], sizes = [8, 32], strides = [1, 1]} : vector<8x128xf32> to vector<8x32xf32>
    %196 = vector.extract_strided_slice %192 {offsets = [0, 64], sizes = [8, 32], strides = [1, 1]} : vector<8x128xf32> to vector<8x32xf32>
    %197 = arith.mulf %193, %175 : vector<8x32xf32>
    %198 = arith.mulf %194, %196 : vector<8x32xf32>
    %199 = arith.addf %197, %198 : vector<8x32xf32>
    %200 = math.tanh %199 : vector<8x32xf32>
    %201 = arith.mulf %195, %200 : vector<8x32xf32>
    %202 = tpu.concatenate %201, %199 in 1 : vector<8x32xf32>, vector<8x32xf32> -> vector<8x64xf32>
    %203 = arith.index_cast %182 : i32 to index
    %c0_53 = arith.constant 0 : index
    %204 = vector.load %arg7[%203, %c0_53] : memref<64x64xf32, #tpu.memory_space<vmem>>, vector<8x64xf32>
    tpu.vector_store %arg7[%203, %c0_53], %202 {strides = array<i32>} : memref<64x64xf32, #tpu.memory_space<vmem>>, vector<8x64xf32>,
    %c8_i32_54 = arith.constant 8 : i32
    %c0_55 = arith.constant 0 : index
    %c0_56 = arith.constant 0 : index
    %205 = vector.load %arg8[%c0_55, %c0_56] : memref<8x32xf32, #tpu.memory_space<vmem>>, vector<8x32xf32>
    tpu.vector_store %arg8[%c0_55, %c0_56], %201 {strides = array<i32>} : memref<8x32xf32, #tpu.memory_space<vmem>>, vector<8x32xf32>,
    %c0_57 = arith.constant 0 : index
    %c0_58 = arith.constant 0 : index
    %206 = vector.load %arg9[%c0_57, %c0_58] : memref<8x32xf32, #tpu.memory_space<vmem>>, vector<8x32xf32>
    tpu.vector_store %arg9[%c0_57, %c0_58], %199 {strides = array<i32>} : memref<8x32xf32, #tpu.memory_space<vmem>>, vector<8x32xf32>,
    return
  }
  func.func @transform_0(%arg0: i32) -> (i32, i32) {
    %c0_i32 = arith.constant 0 : i32
    %c0_i32_0 = arith.constant 0 : i32
    return %arg0, %c0_i32 : i32, i32
  }
  func.func @transform_1(%arg0: i32) -> (i32, i32) {
    %c0_i32 = arith.constant 0 : i32
    %c0_i32_0 = arith.constant 0 : i32
    %c0_i32_1 = arith.constant 0 : i32
    return %c0_i32, %c0_i32_0 : i32, i32
  }
  func.func @transform_2(%arg0: i32) -> (i32, i32) {
    %c0_i32 = arith.constant 0 : i32
    %c0_i32_0 = arith.constant 0 : i32
    %c0_i32_1 = arith.constant 0 : i32
    return %c0_i32, %c0_i32_0 : i32, i32
  }
  func.func @transform_3(%arg0: i32) -> (i32, i32) {
    %c0_i32 = arith.constant 0 : i32
    %c0_i32_0 = arith.constant 0 : i32
    %c0_i32_1 = arith.constant 0 : i32
    return %c0_i32, %c0_i32_0 : i32, i32
  }
  func.func @transform_4(%arg0: i32) -> (i32, i32) {
    %c0_i32 = arith.constant 0 : i32
    %c0_i32_0 = arith.constant 0 : i32
    %c0_i32_1 = arith.constant 0 : i32
    return %c0_i32, %c0_i32_0 : i32, i32
  }
  func.func @transform_5(%arg0: i32) -> (i32, i32) {
    %c0_i32 = arith.constant 0 : i32
    %c0_i32_0 = arith.constant 0 : i32
    %c0_i32_1 = arith.constant 0 : i32
    return %c0_i32, %c0_i32_0 : i32, i32
  }
  func.func @transform_6(%arg0: i32) -> (i32, i32) {
    %c0_i32 = arith.constant 0 : i32
    %c0_i32_0 = arith.constant 0 : i32
    return %arg0, %c0_i32 : i32, i32
  }
}

</mosaic_0001>

<llo_original>
// kernel: lstm_sequence_pallas.1
$region0: #{lstm_sequence_pallas.1}
  #allocation0 [shape = 'u32[]', space=smem, size = 0x4, offset = 0x4, fixed_abs, tag = 'smem constant byte address 0x4 - core index']
  #allocation1 [shape = 'u32[72,128]{1,0:T(1,128)}', space=vmem, size = 0x9000, scoped, tag = 'internal scratch']
  #allocation2 [shape = 'f32[8,32]{1,0:T(8,128)}', space=vmem, size = 0x1000, scoped, tag = 'scratch operand']
  #allocation3 [shape = 'f32[8,32]{1,0:T(8,128)}', space=vmem, size = 0x1000, scoped, tag = 'scratch operand']
  #allocation4 [shape = 'f32[64,128]{1,0:T(8,128)}', space=vmem, size = 0x8000, scoped, tag = 'scratch operand']
  %s0 = inlined_call_operand.vmem [shape: f32[64,16], index: 0, kind: input, shape index: {}]
  %s1 = inlined_call_operand.vmem [shape: f32[8,32], index: 1, kind: input, shape index: {}]
  %s2 = inlined_call_operand.vmem [shape: f32[8,32], index: 2, kind: input, shape index: {}]
  %s3 = inlined_call_operand.vmem [shape: f32[16,128], index: 3, kind: input, shape index: {}]
  %s4 = inlined_call_operand.vmem [shape: f32[32,128], index: 4, kind: input, shape index: {}]
  %s5 = inlined_call_operand.vmem [shape: f32[1,128], index: 5, kind: input, shape index: {}]
  %s6 = inlined_call_operand.vmem [shape: f32[64,64], index: 6, kind: output, shape index: {}]
  %s7 = sld [smem:[#allocation0]]
  $region38: #{lstm_sequence_pallas.1} parent=0
    _
  %s9 = ssub.s32 1, %s7
  %s10 = scalar_select 0, %s9, %s7
  // Predicated region
  $region2: #{lstm_sequence_pallas.1} parent=0 // pred_check
    _
  $region3: #{lstm_sequence_pallas.1} parent=0 // pred_check_branch
    %12 = sbr.rel (0) target = $region5
  $region4: #{lstm_sequence_pallas.1} parent=0 // pred_region
    _
  $region5: #{lstm_sequence_pallas.1} parent=0 // pred_fallthru
    _
  // Predicated region
  $region6: #{lstm_sequence_pallas.1} parent=0 // pred_check
    _
  $region7: #{lstm_sequence_pallas.1} parent=0 // pred_check_branch
    %14 = sbr.rel (0) target = $region9
  $region8: #{lstm_sequence_pallas.1} parent=0 // pred_region
    _
  $region9: #{lstm_sequence_pallas.1} parent=0 // pred_fallthru
    _
  // Predicated region
  $region10: #{lstm_sequence_pallas.1} parent=0 // pred_check
    _
  $region11: #{lstm_sequence_pallas.1} parent=0 // pred_check_branch
    %16 = sbr.rel (0) target = $region13
  $region12: #{lstm_sequence_pallas.1} parent=0 // pred_region
    _
  $region13: #{lstm_sequence_pallas.1} parent=0 // pred_fallthru
    _
  // Predicated region
  $region14: #{lstm_sequence_pallas.1} parent=0 // pred_check
    _
  $region15: #{lstm_sequence_pallas.1} parent=0 // pred_check_branch
    %18 = sbr.rel (0) target = $region17
  $region16: #{lstm_sequence_pallas.1} parent=0 // pred_region
    _
  $region17: #{lstm_sequence_pallas.1} parent=0 // pred_fallthru
    _
  // Predicated region
  $region18: #{lstm_sequence_pallas.1} parent=0 // pred_check
    _
  $region19: #{lstm_sequence_pallas.1} parent=0 // pred_check_branch
    %20 = sbr.rel (0) target = $region21
  $region20: #{lstm_sequence_pallas.1} parent=0 // pred_region
    _
  $region21: #{lstm_sequence_pallas.1} parent=0 // pred_fallthru
    _
  // Predicated region
  $region22: #{lstm_sequence_pallas.1} parent=0 // pred_check
    _
  $region23: #{lstm_sequence_pallas.1} parent=0 // pred_check_branch
    %22 = sbr.rel (0) target = $region25
  $region24: #{lstm_sequence_pallas.1} parent=0 // pred_region
    _
  $region25: #{lstm_sequence_pallas.1} parent=0 // pred_fallthru
    _
  %p23 = scmp.eq.s32.totalorder 0, 0
  // Predicated region
  $region26: #{lstm_sequence_pallas.1} parent=0 // pred_check
    %p24 = pneg %p23
  $region27: #{lstm_sequence_pallas.1} parent=0 // pred_check_branch
    %26 = sbr.rel (%p24) target = $region29
  $region28: #{lstm_sequence_pallas.1} parent=0 // pred_region
    %v27 = vld [vmem:[%s1] sm:$0xff]
    %vm28 = vcmask 261120
    %29 = vst.msk [vmem:[#allocation2] sm:$0xff] %vm28, %v27
    %v30 = vld [vmem:[%s2] sm:$0xff]
    %31 = vst.msk [vmem:[#allocation3] sm:$0xff] %vm28, %v30
  $region29: #{lstm_sequence_pallas.1} parent=0 // pred_fallthru
    _
  %v32 = vld [vmem:[%s4] sm:$0xff]
  %v33 = vld [vmem:[%s4 + $0x8] sm:$0xff]
  %v34 = vld [vmem:[%s4 + $0x10] sm:$0xff]
  %v35 = vld [vmem:[%s4 + $0x18] sm:$0xff]
  %v36 = vld [vmem:[%s0] sm:$0xff]
  %v37 = vld [vmem:[%s0 + $0x8] sm:$0xff]
  %v38 = vld [vmem:[%s0 + $0x10] sm:$0xff]
  %v39 = vld [vmem:[%s0 + $0x18] sm:$0xff]
  %v40 = vld [vmem:[%s0 + $0x20] sm:$0xff]
  %v41 = vld [vmem:[%s0 + $0x28] sm:$0xff]
  %v42 = vld [vmem:[%s0 + $0x30] sm:$0xff]
  %v43 = vld [vmem:[%s0 + $0x38] sm:$0xff]
  %v44 = vld [vmem:[%s3] sm:$0xff]
  %v45 = vld [vmem:[%s3 + $0x8] sm:$0xff]
  %v46 = vld [vmem:[%s5] sm:$0x1]
  %v48 = vperm.slane %v46, 0
  %vm50 = vcmask 130048
  %v52 = vsel %vm50, %v36, 0
  %v55 = vsel %vm50, %v37, 0
  %v58 = vsel %vm50, %v38, 0
  %v61 = vsel %vm50, %v39, 0
  %v64 = vsel %vm50, %v40, 0
  %v67 = vsel %vm50, %v41, 0
  %v70 = vsel %vm50, %v42, 0
  %v73 = vsel %vm50, %v43, 0
  %75 = vmatpush.msra.mxu0 0.0
  %76 = vmatpush.msra.mxu0 0.0
  %77 = vmatpush.msra.mxu0 0.0
  %78 = vmatpush.msra.mxu0 0.0
  %79 = vmatpush.msra.mxu0 0.0
  %80 = vmatpush.msra.mxu0 0.0
  %81 = vmatpush.msra.mxu0 0.0
  %82 = vmatpush.msra.mxu0 0.0
  %83 = vmatpush.msra.mxu0 0.0
  %84 = vmatpush.msra.mxu0 0.0
  %85 = vmatpush.msra.mxu0 0.0
  %86 = vmatpush.msra.mxu0 0.0
  %87 = vmatpush.msra.mxu0 0.0
  %88 = vmatpush.msra.mxu0 0.0
  %89 = vmatpush.msra.mxu0 %v45
  %90 = vmatpush.msra.mxu0 %v44
  %91 = vmatmul.f32.gmra.mxu0 %v52
  %v92 = vpop.f32.mrf.mxu0
  %v93 = vadd.f32 %v48, %v92
  %94 = vmatmul.f32.gmra.mxu0 %v55
  %v95 = vpop.f32.mrf.mxu0
  %v96 = vadd.f32 %v48, %v95
  %97 = vmatmul.f32.gmra.mxu0 %v58
  %v98 = vpop.f32.mrf.mxu0
  %v99 = vadd.f32 %v48, %v98
  %100 = vmatmul.f32.gmra.mxu0 %v61
  %v101 = vpop.f32.mrf.mxu0
  %v102 = vadd.f32 %v48, %v101
  %103 = vmatmul.f32.gmra.mxu0 %v64
  %v104 = vpop.f32.mrf.mxu0
  %v105 = vadd.f32 %v48, %v104
  %106 = vmatmul.f32.gmra.mxu0 %v67
  %v107 = vpop.f32.mrf.mxu0
  %v108 = vadd.f32 %v48, %v107
  %109 = vmatmul.f32.gmra.mxu0 %v70
  %v110 = vpop.f32.mrf.mxu0
  %v111 = vadd.f32 %v48, %v110
  %112 = vmatmul.f32.gmra.mxu0 %v73
  %v113 = vpop.f32.mrf.mxu0
  %v114 = vadd.f32 %v48, %v113
  %115 = vdwg.mxu0
  %116 = vst [vmem:[#allocation4] sm:$0xff] %v93
  %117 = vst [vmem:[#allocation4 + $0x8] sm:$0xff] %v96
  %118 = vst [vmem:[#allocation4 + $0x10] sm:$0xff] %v99
  %119 = vst [vmem:[#allocation4 + $0x18] sm:$0xff] %v102
  %120 = vst [vmem:[#allocation4 + $0x20] sm:$0xff] %v105
  %121 = vst [vmem:[#allocation4 + $0x28] sm:$0xff] %v108
  %122 = vst [vmem:[#allocation4 + $0x30] sm:$0xff] %v111
  %123 = vst [vmem:[#allocation4 + $0x38] sm:$0xff] %v114
  %v124 = vld [vmem:[#allocation2] sm:$0xff]
  %v125 = vld [vmem:[#allocation3] sm:$0xff]
  %v126 = vld [vmem:[#allocation4] sm:$0xff]
  %vm127 = vcmask 261120
  %v129 = vsel %vm127, %v124, 0
  %131 = vmatpush.msra.mxu0 0.0
  %132 = vmatpush.msra.mxu0 0.0
  %133 = vmatpush.msra.mxu0 0.0
  %134 = vmatpush.msra.mxu0 0.0
  %135 = vmatpush.msra.mxu0 0.0
  %136 = vmatpush.msra.mxu0 0.0
  %137 = vmatpush.msra.mxu0 0.0
  %138 = vmatpush.msra.mxu0 0.0
  %139 = vmatpush.msra.mxu0 0.0
  %140 = vmatpush.msra.mxu0 0.0
  %141 = vmatpush.msra.mxu0 0.0
  %142 = vmatpush.msra.mxu0 0.0
  %143 = vmatpush.msra.mxu0 %v35
  %144 = vmatpush.msra.mxu0 %v34
  %145 = vmatpush.msra.mxu0 %v33
  %146 = vmatpush.msra.mxu0 %v32
  %147 = vmatmul.f32.gmra.mxu0 %v129
  %v148 = vpop.f32.mrf.mxu0
  %v149 = vadd.f32 0.0, %v148
  %150 = vdwg.mxu0
  %v151 = vadd.f32 %v126, %v149
  %v152 = vxor.u32 %v151, 2147483648
  %v153 = vmul.f32 %v152, 1.442695
  %v154 = vpow.pop %v153
  %v155 = vadd.f32 %v154, 1.0
  %v156 = vrcp.pop %v155
  %v157 = vmul.f32 %v155, %v156
  %v158 = vsub.f32 1.0, %v157
  %v159 = vmul.f32 %v156, %v158
  %v160 = vadd.f32 %v156, %v159
  %vm161 = vweird.f32 %v155
  %vm162 = vweird.f32 %v156
  %vm163 = vmor %vm161, %vm162
  %v164 = vsel %vm163, %v156, %v160
  %v165 = vand.u32 2147483647, %v155
  %vm166 = vcmp.eq.f32.partialorder %v165, 8.507059e+37
  %v167 = vand.u32 %v155, 2147483648
  %v168 = vor.u32 1.1754944e-38, %v167
  %v169 = vsel %vm166, %v168, %v164
  %v170 = vmul.f32 1.0, %v169
  %v171 = vtanh.pop %v151
  %v172 = vmul.f32 %v170, %v125
  %174 = vrot.lane.b32.xlu0 %v171, 96
  %v175 = vpop.permute.xlu0 %174
  %v177 = vmul.f32 %v170, %v175
  %179 = vrot.lane.b32.xlu0 %v177, 96
  %v180 = vpop.permute.xlu0 %179
  %v182 = vadd.f32 %v172, %v180
  %v183 = vtanh.pop %v182
  %185 = vrot.lane.b32.xlu0 %v183, 96
  %v186 = vpop.permute.xlu0 %185
  %v188 = vmul.f32 %v170, %v186
  %190 = vrot.lane.b32.xlu0 %v188, 32
  %v191 = vpop.permute.xlu0 %190
  %194 = vrot.lane.b32.xlu0 %v182, 32
  %v195 = vpop.permute.xlu0 %194
  %v197 = vsel %vm127, %v191, %v195
  %vm198 = vcmask 523264
  %199 = vst.msk [vmem:[%s6] sm:$0xff] %vm198, %v197
  %s200 = scalar_lea.vmem [#allocation4], 8
  %v201 = vld [vmem:[%s200] sm:$0xff]
  %v202 = vsel %vm127, %v191, 0
  %204 = vmatpush.msra.mxu0 0.0
  %205 = vmatpush.msra.mxu0 0.0
  %206 = vmatpush.msra.mxu0 0.0
  %207 = vmatpush.msra.mxu0 0.0
  %208 = vmatpush.msra.mxu0 0.0
  %209 = vmatpush.msra.mxu0 0.0
  %210 = vmatpush.msra.mxu0 0.0
  %211 = vmatpush.msra.mxu0 0.0
  %212 = vmatpush.msra.mxu0 0.0
  %213 = vmatpush.msra.mxu0 0.0
  %214 = vmatpush.msra.mxu0 0.0
  %215 = vmatpush.msra.mxu0 0.0
  %216 = vmatpush.msra.mxu0 %v35
  %217 = vmatpush.msra.mxu0 %v34
  %218 = vmatpush.msra.mxu0 %v33
  %219 = vmatpush.msra.mxu0 %v32
  %220 = vmatmul.f32.gmra.mxu0 %v202
  %v221 = vpop.f32.mrf.mxu0
  %v222 = vadd.f32 0.0, %v221
  %223 = vdwg.mxu0
  %v224 = vadd.f32 %v201, %v222
  %v225 = vxor.u32 %v224, 2147483648
  %v226 = vmul.f32 %v225, 1.442695
  %v227 = vpow.pop %v226
  %v228 = vadd.f32 %v227, 1.0
  %v229 = vrcp.pop %v228
  %v230 = vmul.f32 %v228, %v229
  %v231 = vsub.f32 1.0, %v230
  %v232 = vmul.f32 %v229, %v231
  %v233 = vadd.f32 %v229, %v232
  %vm234 = vweird.f32 %v228
  %vm235 = vweird.f32 %v229
  %vm236 = vmor %vm234, %vm235
  %v237 = vsel %vm236, %v229, %v233
  %v238 = vand.u32 2147483647, %v228
  %vm239 = vcmp.eq.f32.partialorder %v238, 8.507059e+37
  %v240 = vand.u32 %v228, 2147483648
  %v241 = vor.u32 1.1754944e-38, %v240
  %v242 = vsel %vm239, %v241, %v237
  %v243 = vmul.f32 1.0, %v242
  %v244 = vtanh.pop %v224
  %v245 = vmul.f32 %v243, %v182
  %247 = vrot.lane.b32.xlu0 %v244, 96
  %v248 = vpop.permute.xlu0 %247
  %v250 = vmul.f32 %v243, %v248
  %252 = vrot.lane.b32.xlu0 %v250, 96
  %v253 = vpop.permute.xlu0 %252
  %v255 = vadd.f32 %v245, %v253
  %v256 = vtanh.pop %v255
  %258 = vrot.lane.b32.xlu0 %v256, 96
  %v259 = vpop.permute.xlu0 %258
  %v261 = vmul.f32 %v243, %v259
  %263 = vrot.lane.b32.xlu0 %v261, 32
  %v264 = vpop.permute.xlu0 %263
  %267 = vrot.lane.b32.xlu0 %v255, 32
  %v268 = vpop.permute.xlu0 %267
  %v270 = vsel %vm127, %v264, %v268
  %s271 = scalar_lea.vmem %s6, 8
  %272 = vst.msk [vmem:[%s271] sm:$0xff] %vm198, %v270
  %s273 = scalar_lea.vmem [#allocation4], 16
  %v274 = vld [vmem:[%s273] sm:$0xff]
  %v275 = vsel %vm127, %v264, 0
  %277 = vmatpush.msra.mxu0 0.0
  %278 = vmatpush.msra.mxu0 0.0
  %279 = vmatpush.msra.mxu0 0.0
  %280 = vmatpush.msra.mxu0 0.0
  %281 = vmatpush.msra.mxu0 0.0
  %282 = vmatpush.msra.mxu0 0.0
  %283 = vmatpush.msra.mxu0 0.0
  %284 = vmatpush.msra.mxu0 0.0
  %285 = vmatpush.msra.mxu0 0.0
  %286 = vmatpush.msra.mxu0 0.0
  %287 = vmatpush.msra.mxu0 0.0
  %288 = vmatpush.msra.mxu0 0.0
  %289 = vmatpush.msra.mxu0 %v35
  %290 = vmatpush.msra.mxu0 %v34
  %291 = vmatpush.msra.mxu0 %v33
  %292 = vmatpush.msra.mxu0 %v32
  %293 = vmatmul.f32.gmra.mxu0 %v275
  %v294 = vpop.f32.mrf.mxu0
  %v295 = vadd.f32 0.0, %v294
  %296 = vdwg.mxu0
  %v297 = vadd.f32 %v274, %v295
  %v298 = vxor.u32 %v297, 2147483648
  %v299 = vmul.f32 %v298, 1.442695
  %v300 = vpow.pop %v299
  %v301 = vadd.f32 %v300, 1.0
  %v302 = vrcp.pop %v301
  %v303 = vmul.f32 %v301, %v302
  %v304 = vsub.f32 1.0, %v303
  %v305 = vmul.f32 %v302, %v304
  %v306 = vadd.f32 %v302, %v305
  %vm307 = vweird.f32 %v301
  %vm308 = vweird.f32 %v302
  %vm309 = vmor %vm307, %vm308
  %v310 = vsel %vm309, %v302, %v306
  %v311 = vand.u32 2147483647, %v301
  %vm312 = vcmp.eq.f32.partialorder %v311, 8.507059e+37
  %v313 = vand.u32 %v301, 2147483648
  %v314 = vor.u32 1.1754944e-38, %v313
  %v315 = vsel %vm312, %v314, %v310
  %v316 = vmul.f32 1.0, %v315
  %v317 = vtanh.pop %v297
  %v318 = vmul.f32 %v316, %v255
  %320 = vrot.lane.b32.xlu0 %v317, 96
  %v321 = vpop.permute.xlu0 %320
  %v323 = vmul.f32 %v316, %v321
  %325 = vrot.lane.b32.xlu0 %v323, 96
  %v326 = vpop.permute.xlu0 %325
  %v328 = vadd.f32 %v318, %v326
  %v329 = vtanh.pop %v328
  %331 = vrot.lane.b32.xlu0 %v329, 96
  %v332 = vpop.permute.xlu0 %331
  %v334 = vmul.f32 %v316, %v332
  %336 = vrot.lane.b32.xlu0 %v334, 32
  %v337 = vpop.permute.xlu0 %336
  %340 = vrot.lane.b32.xlu0 %v328, 32
  %v341 = vpop.permute.xlu0 %340
  %v343 = vsel %vm127, %v337, %v341
  %s344 = scalar_lea.vmem %s6, 16
  %345 = vst.msk [vmem:[%s344] sm:$0xff] %vm198, %v343
  %s346 = scalar_lea.vmem [#allocation4], 24
  %v347 = vld [vmem:[%s346] sm:$0xff]
  %v348 = vsel %vm127, %v337, 0
  %350 = vmatpush.msra.mxu0 0.0
  %351 = vmatpush.msra.mxu0 0.0
  %352 = vmatpush.msra.mxu0 0.0
  %353 = vmatpush.msra.mxu0 0.0
  %354 = vmatpush.msra.mxu0 0.0
  %355 = vmatpush.msra.mxu0 0.0
  %356 = vmatpush.msra.mxu0 0.0
  %357 = vmatpush.msra.mxu0 0.0
  %358 = vmatpush.msra.mxu0 0.0
  %359 = vmatpush.msra.mxu0 0.0
  %360 = vmatpush.msra.mxu0 0.0
  %361 = vmatpush.msra.mxu0 0.0
  %362 = vmatpush.msra.mxu0 %v35
  %363 = vmatpush.msra.mxu0 %v34
  %364 = vmatpush.msra.mxu0 %v33
  %365 = vmatpush.msra.mxu0 %v32
  %366 = vmatmul.f32.gmra.mxu0 %v348
  %v367 = vpop.f32.mrf.mxu0
  %v368 = vadd.f32 0.0, %v367
  %369 = vdwg.mxu0
  %v370 = vadd.f32 %v347, %v368
  %v371 = vxor.u32 %v370, 2147483648
  %v372 = vmul.f32 %v371, 1.442695
  %v373 = vpow.pop %v372
  %v374 = vadd.f32 %v373, 1.0
  %v375 = vrcp.pop %v374
  %v376 = vmul.f32 %v374, %v375
  %v377 = vsub.f32 1.0, %v376
  %v378 = vmul.f32 %v375, %v377
  %v379 = vadd.f32 %v375, %v378
  %vm380 = vweird.f32 %v374
  %vm381 = vweird.f32 %v375
  %vm382 = vmor %vm380, %vm381
  %v383 = vsel %vm382, %v375, %v379
  %v384 = vand.u32 2147483647, %v374
  %vm385 = vcmp.eq.f32.partialorder %v384, 8.507059e+37
  %v386 = vand.u32 %v374, 2147483648
  %v387 = vor.u32 1.1754944e-38, %v386
  %v388 = vsel %vm385, %v387, %v383
  %v389 = vmul.f32 1.0, %v388
  %v390 = vtanh.pop %v370
  %v391 = vmul.f32 %v389, %v328
  %393 = vrot.lane.b32.xlu0 %v390, 96
  %v394 = vpop.permute.xlu0 %393
  %v396 = vmul.f32 %v389, %v394
  %398 = vrot.lane.b32.xlu0 %v396, 96
  %v399 = vpop.permute.xlu0 %398
  %v401 = vadd.f32 %v391, %v399
  %v402 = vtanh.pop %v401
  %404 = vrot.lane.b32.xlu0 %v402, 96
  %v405 = vpop.permute.xlu0 %404
  %v407 = vmul.f32 %v389, %v405
  %409 = vrot.lane.b32.xlu0 %v407, 32
  %v410 = vpop.permute.xlu0 %409
  %413 = vrot.lane.b32.xlu0 %v401, 32
  %v414 = vpop.permute.xlu0 %413
  %v416 = vsel %vm127, %v410, %v414
  %s417 = scalar_lea.vmem %s6, 24
  %418 = vst.msk [vmem:[%s417] sm:$0xff] %vm198, %v416
  %s419 = scalar_lea.vmem [#allocation4], 32
  %v420 = vld [vmem:[%s419] sm:$0xff]
  %v421 = vsel %vm127, %v410, 0
  %423 = vmatpush.msra.mxu0 0.0
  %424 = vmatpush.msra.mxu0 0.0
  %425 = vmatpush.msra.mxu0 0.0
  %426 = vmatpush.msra.mxu0 0.0
  %427 = vmatpush.msra.mxu0 0.0
  %428 = vmatpush.msra.mxu0 0.0
  %429 = vmatpush.msra.mxu0 0.0
  %430 = vmatpush.msra.mxu0 0.0
  %431 = vmatpush.msra.mxu0 0.0
  %432 = vmatpush.msra.mxu0 0.0
  %433 = vmatpush.msra.mxu0 0.0
  %434 = vmatpush.msra.mxu0 0.0
  %435 = vmatpush.msra.mxu0 %v35
  %436 = vmatpush.msra.mxu0 %v34
  %437 = vmatpush.msra.mxu0 %v33
  %438 = vmatpush.msra.mxu0 %v32
  %439 = vmatmul.f32.gmra.mxu0 %v421
  %v440 = vpop.f32.mrf.mxu0
  %v441 = vadd.f32 0.0, %v440
  %442 = vdwg.mxu0
  %v443 = vadd.f32 %v420, %v441
  %v444 = vxor.u32 %v443, 2147483648
  %v445 = vmul.f32 %v444, 1.442695
  %v446 = vpow.pop %v445
  %v447 = vadd.f32 %v446, 1.0
  %v448 = vrcp.pop %v447
  %v449 = vmul.f32 %v447, %v448
  %v450 = vsub.f32 1.0, %v449
  %v451 = vmul.f32 %v448, %v450
  %v452 = vadd.f32 %v448, %v451
  %vm453 = vweird.f32 %v447
  %vm454 = vweird.f32 %v448
  %vm455 = vmor %vm453, %vm454
  %v456 = vsel %vm455, %v448, %v452
  %v457 = vand.u32 2147483647, %v447
  %vm458 = vcmp.eq.f32.partialorder %v457, 8.507059e+37
  %v459 = vand.u32 %v447, 2147483648
  %v460 = vor.u32 1.1754944e-38, %v459
  %v461 = vsel %vm458, %v460, %v456
  %v462 = vmul.f32 1.0, %v461
  %v463 = vtanh.pop %v443
  %v464 = vmul.f32 %v462, %v401
  %466 = vrot.lane.b32.xlu0 %v463, 96
  %v467 = vpop.permute.xlu0 %466
  %v469 = vmul.f32 %v462, %v467
  %471 = vrot.lane.b32.xlu0 %v469, 96
  %v472 = vpop.permute.xlu0 %471
  %v474 = vadd.f32 %v464, %v472
  %v475 = vtanh.pop %v474
  %477 = vrot.lane.b32.xlu0 %v475, 96
  %v478 = vpop.permute.xlu0 %477
  %v480 = vmul.f32 %v462, %v478
  %482 = vrot.lane.b32.xlu0 %v480, 32
  %v483 = vpop.permute.xlu0 %482
  %486 = vrot.lane.b32.xlu0 %v474, 32
  %v487 = vpop.permute.xlu0 %486
  %v489 = vsel %vm127, %v483, %v487
  %s490 = scalar_lea.vmem %s6, 32
  %491 = vst.msk [vmem:[%s490] sm:$0xff] %vm198, %v489
  %s492 = scalar_lea.vmem [#allocation4], 40
  %v493 = vld [vmem:[%s492] sm:$0xff]
  %v494 = vsel %vm127, %v483, 0
  %496 = vmatpush.msra.mxu0 0.0
  %497 = vmatpush.msra.mxu0 0.0
  %498 = vmatpush.msra.mxu0 0.0
  %499 = vmatpush.msra.mxu0 0.0
  %500 = vmatpush.msra.mxu0 0.0
  %501 = vmatpush.msra.mxu0 0.0
  %502 = vmatpush.msra.mxu0 0.0
  %503 = vmatpush.msra.mxu0 0.0
  %504 = vmatpush.msra.mxu0 0.0
  %505 = vmatpush.msra.mxu0 0.0
  %506 = vmatpush.msra.mxu0 0.0
  %507 = vmatpush.msra.mxu0 0.0
  %508 = vmatpush.msra.mxu0 %v35
  %509 = vmatpush.msra.mxu0 %v34
  %510 = vmatpush.msra.mxu0 %v33
  %511 = vmatpush.msra.mxu0 %v32
  %512 = vmatmul.f32.gmra.mxu0 %v494
  %v513 = vpop.f32.mrf.mxu0
  %v514 = vadd.f32 0.0, %v513
  %515 = vdwg.mxu0
  %v516 = vadd.f32 %v493, %v514
  %v517 = vxor.u32 %v516, 2147483648
  %v518 = vmul.f32 %v517, 1.442695
  %v519 = vpow.pop %v518
  %v520 = vadd.f32 %v519, 1.0
  %v521 = vrcp.pop %v520
  %v522 = vmul.f32 %v520, %v521
  %v523 = vsub.f32 1.0, %v522
  %v524 = vmul.f32 %v521, %v523
  %v525 = vadd.f32 %v521, %v524
  %vm526 = vweird.f32 %v520
  %vm527 = vweird.f32 %v521
  %vm528 = vmor %vm526, %vm527
  %v529 = vsel %vm528, %v521, %v525
  %v530 = vand.u32 2147483647, %v520
  %vm531 = vcmp.eq.f32.partialorder %v530, 8.507059e+37
  %v532 = vand.u32 %v520, 2147483648
  %v533 = vor.u32 1.1754944e-38, %v532
  %v534 = vsel %vm531, %v533, %v529
  %v535 = vmul.f32 1.0, %v534
  %v536 = vtanh.pop %v516
  %v537 = vmul.f32 %v535, %v474
  %539 = vrot.lane.b32.xlu0 %v536, 96
  %v540 = vpop.permute.xlu0 %539
  %v542 = vmul.f32 %v535, %v540
  %544 = vrot.lane.b32.xlu0 %v542, 96
  %v545 = vpop.permute.xlu0 %544
  %v547 = vadd.f32 %v537, %v545
  %v548 = vtanh.pop %v547
  %550 = vrot.lane.b32.xlu0 %v548, 96
  %v551 = vpop.permute.xlu0 %550
  %v553 = vmul.f32 %v535, %v551
  %555 = vrot.lane.b32.xlu0 %v553, 32
  %v556 = vpop.permute.xlu0 %555
  %559 = vrot.lane.b32.xlu0 %v547, 32
  %v560 = vpop.permute.xlu0 %559
  %v562 = vsel %vm127, %v556, %v560
  %s563 = scalar_lea.vmem %s6, 40
  %564 = vst.msk [vmem:[%s563] sm:$0xff] %vm198, %v562
  %s565 = scalar_lea.vmem [#allocation4], 48
  %v566 = vld [vmem:[%s565] sm:$0xff]
  %v567 = vsel %vm127, %v556, 0
  %569 = vmatpush.msra.mxu0 0.0
  %570 = vmatpush.msra.mxu0 0.0
  %571 = vmatpush.msra.mxu0 0.0
  %572 = vmatpush.msra.mxu0 0.0
  %573 = vmatpush.msra.mxu0 0.0
  %574 = vmatpush.msra.mxu0 0.0
  %575 = vmatpush.msra.mxu0 0.0
  %576 = vmatpush.msra.mxu0 0.0
  %577 = vmatpush.msra.mxu0 0.0
  %578 = vmatpush.msra.mxu0 0.0
  %579 = vmatpush.msra.mxu0 0.0
  %580 = vmatpush.msra.mxu0 0.0
  %581 = vmatpush.msra.mxu0 %v35
  %582 = vmatpush.msra.mxu0 %v34
  %583 = vmatpush.msra.mxu0 %v33
  %584 = vmatpush.msra.mxu0 %v32
  %585 = vmatmul.f32.gmra.mxu0 %v567
  %v586 = vpop.f32.mrf.mxu0
  %v587 = vadd.f32 0.0, %v586
  %588 = vdwg.mxu0
  %v589 = vadd.f32 %v566, %v587
  %v590 = vxor.u32 %v589, 2147483648
  %v591 = vmul.f32 %v590, 1.442695
  %v592 = vpow.pop %v591
  %v593 = vadd.f32 %v592, 1.0
  %v594 = vrcp.pop %v593
  %v595 = vmul.f32 %v593, %v594
  %v596 = vsub.f32 1.0, %v595
  %v597 = vmul.f32 %v594, %v596
  %v598 = vadd.f32 %v594, %v597
  %vm599 = vweird.f32 %v593
  %vm600 = vweird.f32 %v594
  %vm601 = vmor %vm599, %vm600
  %v602 = vsel %vm601, %v594, %v598
  %v603 = vand.u32 2147483647, %v593
  %vm604 = vcmp.eq.f32.partialorder %v603, 8.507059e+37
  %v605 = vand.u32 %v593, 2147483648
  %v606 = vor.u32 1.1754944e-38, %v605
  %v607 = vsel %vm604, %v606, %v602
  %v608 = vmul.f32 1.0, %v607
  %v609 = vtanh.pop %v589
  %v610 = vmul.f32 %v608, %v547
  %612 = vrot.lane.b32.xlu0 %v609, 96
  %v613 = vpop.permute.xlu0 %612
  %v615 = vmul.f32 %v608, %v613
  %617 = vrot.lane.b32.xlu0 %v615, 96
  %v618 = vpop.permute.xlu0 %617
  %v620 = vadd.f32 %v610, %v618
  %v621 = vtanh.pop %v620
  %623 = vrot.lane.b32.xlu0 %v621, 96
  %v624 = vpop.permute.xlu0 %623
  %v626 = vmul.f32 %v608, %v624
  %628 = vrot.lane.b32.xlu0 %v626, 32
  %v629 = vpop.permute.xlu0 %628
  %632 = vrot.lane.b32.xlu0 %v620, 32
  %v633 = vpop.permute.xlu0 %632
  %v635 = vsel %vm127, %v629, %v633
  %s636 = scalar_lea.vmem %s6, 48
  %637 = vst.msk [vmem:[%s636] sm:$0xff] %vm198, %v635
  %s638 = scalar_lea.vmem [#allocation4], 56
  %v639 = vld [vmem:[%s638] sm:$0xff]
  %v640 = vsel %vm127, %v629, 0
  %642 = vmatpush.msra.mxu0 0.0
  %643 = vmatpush.msra.mxu0 0.0
  %644 = vmatpush.msra.mxu0 0.0
  %645 = vmatpush.msra.mxu0 0.0
  %646 = vmatpush.msra.mxu0 0.0
  %647 = vmatpush.msra.mxu0 0.0
  %648 = vmatpush.msra.mxu0 0.0
  %649 = vmatpush.msra.mxu0 0.0
  %650 = vmatpush.msra.mxu0 0.0
  %651 = vmatpush.msra.mxu0 0.0
  %652 = vmatpush.msra.mxu0 0.0
  %653 = vmatpush.msra.mxu0 0.0
  %654 = vmatpush.msra.mxu0 %v35
  %655 = vmatpush.msra.mxu0 %v34
  %656 = vmatpush.msra.mxu0 %v33
  %657 = vmatpush.msra.mxu0 %v32
  %658 = vmatmul.f32.gmra.mxu0 %v640
  %v659 = vpop.f32.mrf.mxu0
  %v660 = vadd.f32 0.0, %v659
  %661 = vdwg.mxu0
  %v662 = vadd.f32 %v639, %v660
  %v663 = vxor.u32 %v662, 2147483648
  %v664 = vmul.f32 %v663, 1.442695
  %v665 = vpow.pop %v664
  %v666 = vadd.f32 %v665, 1.0
  %v667 = vrcp.pop %v666
  %v668 = vmul.f32 %v666, %v667
  %v669 = vsub.f32 1.0, %v668
  %v670 = vmul.f32 %v667, %v669
  %v671 = vadd.f32 %v667, %v670
  %vm672 = vweird.f32 %v666
  %vm673 = vweird.f32 %v667
  %vm674 = vmor %vm672, %vm673
  %v675 = vsel %vm674, %v667, %v671
  %v676 = vand.u32 2147483647, %v666
  %vm677 = vcmp.eq.f32.partialorder %v676, 8.507059e+37
  %v678 = vand.u32 %v666, 2147483648
  %v679 = vor.u32 1.1754944e-38, %v678
  %v680 = vsel %vm677, %v679, %v675
  %v681 = vmul.f32 1.0, %v680
  %v682 = vtanh.pop %v662
  %v683 = vmul.f32 %v681, %v620
  %685 = vrot.lane.b32.xlu0 %v682, 96
  %v686 = vpop.permute.xlu0 %685
  %v688 = vmul.f32 %v681, %v686
  %690 = vrot.lane.b32.xlu0 %v688, 96
  %v691 = vpop.permute.xlu0 %690
  %v693 = vadd.f32 %v683, %v691
  %v694 = vtanh.pop %v693
  %696 = vrot.lane.b32.xlu0 %v694, 96
  %v697 = vpop.permute.xlu0 %696
  %v699 = vmul.f32 %v681, %v697
  %701 = vrot.lane.b32.xlu0 %v699, 32
  %v702 = vpop.permute.xlu0 %701
  %705 = vrot.lane.b32.xlu0 %v693, 32
  %v706 = vpop.permute.xlu0 %705
  %v708 = vsel %vm127, %v702, %v706
  %s709 = scalar_lea.vmem %s6, 56
  %710 = vst.msk [vmem:[%s709] sm:$0xff] %vm198, %v708
  %711 = vst.msk [vmem:[#allocation2] sm:$0xff] %vm127, %v702
  %712 = vst.msk [vmem:[#allocation3] sm:$0xff] %vm127, %v693
  // Predicated region
  $region30: #{lstm_sequence_pallas.1} parent=0 // pred_check
    _
  $region31: #{lstm_sequence_pallas.1} parent=0 // pred_check_branch
    %714 = sbr.rel (0) target = $region33
  $region32: #{lstm_sequence_pallas.1} parent=0 // pred_region
    _
  $region33: #{lstm_sequence_pallas.1} parent=0 // pred_fallthru
    _
  // Predicated region
  $region34: #{lstm_sequence_pallas.1} parent=0 // pred_check
    _
  $region35: #{lstm_sequence_pallas.1} parent=0 // pred_check_branch
    %716 = sbr.rel (0) target = $region37
  $region36: #{lstm_sequence_pallas.1} parent=0 // pred_region
    _
  $region37: #{lstm_sequence_pallas.1} parent=0 // pred_fallthru
    _

</llo_original>
